<compile_context>
chip_gen: v6e
topology: v6e:2x2x1
jax: 0.10.0
libtpu: 0.0.40
codegen_flags: <defaults>
</compile_context>

<pallas_src>
import math
import functools

import jax
import jax.numpy as jnp
from jax.experimental import pallas as pl
from jax.experimental.pallas import tpu as pltpu


_VMEM_LIMIT_BYTES = 32 * 1024 * 1024   # scoped-VMEM cap, safe on v5e/v6e/v7x per-TC
_TILE_VMEM_BUDGET = 16 * 1024 * 1024   # total live-set target (DMA bufs + temps)
_MAX_LANES = 16384                      # cap on folded lane width


def make_positional_encoding(d_model, max_len=5000, dtype=jnp.float32):
    """Reference sin/cos table, identical to the PyTorch buffer `pe`
    (before unsqueeze/transpose): shape (max_len, d_model).  Used only for
    validation -- the kernel regenerates pe on the fly."""
    if d_model % 2 != 0:
        raise ValueError("d_model must be even (same limitation as the PyTorch module).")
    position = jnp.arange(max_len, dtype=jnp.float32)[:, None]
    div_term = jnp.exp(jnp.arange(0, d_model, 2, dtype=jnp.float32)
                       * (-math.log(10000.0) / d_model))
    angles = position * div_term
    pe = jnp.zeros((max_len, d_model), dtype=jnp.float32)
    pe = pe.at[:, 0::2].set(jnp.sin(angles))
    pe = pe.at[:, 1::2].set(jnp.cos(angles))
    return pe.astype(dtype)


def _choose_fold(seq_len, bd):
    """Smallest k dividing seq_len with (k*bd) % 128 == 0 (prefer >= 512 lanes)."""
    fallback = 1
    for k in range(1, seq_len + 1):
        if k * bd > _MAX_LANES:
            break
        if seq_len % k or (k * bd) % 128:
            continue
        if k * bd >= 512:
            return k
        if fallback == 1:
            fallback = k
    return fallback


def _pe_kernel(*refs, fold, n_chunks, chunk, apply_dropout, drop_threshold, inv_keep):
    if apply_dropout:
        seed_ref, x_ref, div_ref, odd_ref, srow_ref, o_ref = refs
    else:
        x_ref, div_ref, odd_ref, srow_ref, o_ref = refs

    rows = x_ref.shape[0]                          # block rows (static)
    row_base = pl.program_id(0) * rows             # first (folded) row of this tile

    # Positional encoding for this tile, computed once over (rows, chunk).
    local_row = jax.lax.broadcasted_iota(jnp.int32, (rows, chunk), 0)
    grow = row_base + local_row                    # folded-row index (int32)
    s = (grow * fold).astype(jnp.float32) + srow_ref[...]    # global sequence index
    angle = s * div_ref[...]
    odd = odd_ref[...] > 0.5
    pe = jnp.where(odd, jnp.cos(angle), jnp.sin(angle))      # EUP work, hidden by DMA

    if apply_dropout:
        col0 = jax.lax.broadcasted_iota(jnp.int32, (rows, chunk), 1)
        seed_mix = seed_ref[0] * jnp.int32(-1640531527)       # 0x9E3779B9
        row_w = n_chunks * chunk
        scale = jnp.float32(inv_keep)
        thr = jnp.int32(drop_threshold)

    for c in range(n_chunks):                      # static unroll; chunk is 128-aligned
        lo = c * chunk
        y = x_ref[:, lo:lo + chunk].astype(jnp.float32) + pe
        if apply_dropout:
            # Unique global element index -> murmur3 finalizer -> keep mask.
            # Mask depends only on (seed, element position): reproducible
            # across tile sizes, no correlated per-tile seeding.
            h = grow * jnp.int32(row_w) + (col0 + jnp.int32(lo)) + seed_mix
            h = h ^ ((h >> 16) & jnp.int32(0x0000FFFF))
            h = h * jnp.int32(-2048144789)          # 0x85EBCA6B
            h = h ^ ((h >> 13) & jnp.int32(0x0007FFFF))
            h = h * jnp.int32(-1028477387)          # 0xC2B2AE35
            h = h ^ ((h >> 16) & jnp.int32(0x0000FFFF))
            keep = (h & jnp.int32(0x7FFFFFFF)) >= thr
            y = jnp.where(keep, y * scale, 0.0)
        o_ref[:, lo:lo + chunk] = y.astype(o_ref.dtype)


def positional_encoding_forward(x, *, p=0.1, training=False, seed=0,
                                tile_rows=None, core_parallel=False):
    """x: (S, B, D).  Returns dropout(x + pe[:S, None, :]) in x.dtype.

    Note: for sub-f32 inputs the add is done in float32 (matching the PyTorch
    promotion against the float32 `pe` buffer) and cast back to x.dtype."""
    S, B, D = x.shape
    if D % 2 != 0:
        raise ValueError("d_model must be even.")
    if not (0.0 <= p < 1.0):
        raise ValueError("dropout p must be in [0, 1)")
    dtype = x.dtype
    itemsize = jnp.dtype(dtype).itemsize
    apply_dropout = bool(training) and p > 0.0

    # ---- choose layout -------------------------------------------------
    use_chunk = (D % 128 == 0)
    if use_chunk:
        fold, n_chunks, chunk = 1, B, D            # pe computed once per row block
    else:
        fold = _choose_fold(S, B * D)              # fold rows into lanes (>=512 dense)
        n_chunks, chunk = 1, fold * B * D
    rows = S // fold
    row_w = n_chunks * chunk
    x2 = x.reshape(rows, row_w)                    # free, contiguous view

    # ---- tiny per-lane constant rows (fetched once, stay resident) -----
    half = jnp.exp(jnp.arange(0, D, 2, dtype=jnp.float32) * (-math.log(10000.0) / D))
    div_d = jnp.repeat(half, 2)                                    # lane d -> div_term[d//2]
    odd_d = (jnp.arange(D, dtype=jnp.int32) % 2).astype(jnp.float32)
    reps = chunk // D
    div_lane = jnp.tile(div_d, reps)[None, :]                      # (1, chunk)
    odd_lane = jnp.tile(odd_d, reps)[None, :]
    if use_chunk:
        srow_lane = jnp.zeros((1, chunk), jnp.float32)
    else:
        srow_lane = jnp.repeat(jnp.arange(fold, dtype=jnp.float32), B * D)[None, :]

    # ---- tile size: budget counts DMA buffers AND in-kernel temporaries -
    n_temps = 10 if apply_dropout else 7
    bytes_per_row = 4 * row_w * itemsize + n_temps * chunk * 4
    if tile_rows is None:
        ts = max(1, _TILE_VMEM_BUDGET // bytes_per_row)
    else:
        ts = int(tile_rows)
    ts = min(ts, rows)
    if ts < rows:
        ts = min(rows, max(8, (ts // 8) * 8))      # sublane-aligned partial tiles
    grid = (pl.cdiv(rows, ts),)

    drop_threshold = min(int(round(p * (1 << 31))), (1 << 31) - 1)
    inv_keep = 1.0 / (1.0 - p)

    kernel = functools.partial(
        _pe_kernel, fold=fold, n_chunks=n_chunks, chunk=chunk,
        apply_dropout=apply_dropout, drop_threshold=drop_threshold, inv_keep=inv_keep)

    data_spec = pl.BlockSpec((ts, row_w), lambda i: (i, 0))
    lane_spec = pl.BlockSpec((1, chunk), lambda i: (0, 0))
    in_specs = [data_spec, lane_spec, lane_spec, lane_spec]
    args = [x2, div_lane, odd_lane, srow_lane]
    if apply_dropout:                              # seed operand only when needed
        in_specs = [pl.BlockSpec(memory_space=pltpu.MemorySpace.SMEM)] + in_specs
        args = [jnp.asarray([seed], dtype=jnp.int32)] + args

    n_elem = S * B * D
    cost = pl.CostEstimate(
        flops=6 * n_elem,
        transcendentals=2 * (n_elem if not use_chunk else S * D),
        bytes_accessed=2 * n_elem * itemsize + 3 * chunk * 4)

    # v7x: pass core_parallel=True to shard the row grid over both TensorCores.
    dims = (pltpu.CORE_PARALLEL,) if core_parallel else ("parallel",)

    out2 = pl.pallas_call(
        kernel,
        out_shape=jax.ShapeDtypeStruct((rows, row_w), dtype),
        grid=grid,
        in_specs=in_specs,
        out_specs=data_spec,
        compiler_params=pltpu.CompilerParams(
            dimension_semantics=dims,
            vmem_limit_bytes=_VMEM_LIMIT_BYTES),
        cost_estimate=cost,
    )(*args)

    return out2.reshape(S, B, D)


if __name__ == "__main__":
    key = jax.random.PRNGKey(0)

    # --- Test 1: module-scale shapes (seq=8, batch=2, d_model=32) -> fold path ---
    S, B, D = 8, 2, 32
    x = jax.random.normal(key, (S, B, D), dtype=jnp.float32)
    pe_tab = make_positional_encoding(D, max_len=5000)
    ref = x + pe_tab[:S][:, None, :]
    out = jax.block_until_ready(positional_encoding_forward(x, p=0.1, training=False))
    assert out.shape == (S, B, D) and out.dtype == x.dtype
    assert jnp.allclose(out, ref, atol=1e-5, rtol=1e-5)

    # --- Test 2: D % 128 == 0 -> chunk path (pe computed once per row, dense stores) ---
    S2, B2, D2 = 64, 2, 128
    x_c = jax.random.normal(jax.random.PRNGKey(1), (S2, B2, D2), dtype=jnp.float32)
    ref_c = x_c + make_positional_encoding(D2)[:S2][:, None, :]
    out_c = jax.block_until_ready(positional_encoding_forward(x_c, p=0.1, training=False))
    assert jnp.allclose(out_c, ref_c, atol=1e-4, rtol=1e-4)

    # --- Test 3: long sequence, multi-tile grid (pipelined DMAs) ---
    S3 = 2048
    x_l = jax.random.normal(jax.random.PRNGKey(2), (S3, B, D), dtype=jnp.float32)
    ref_l = x_l + pe_tab[:S3][:, None, :]
    out_l = jax.block_until_ready(
        positional_encoding_forward(x_l, p=0.1, training=False, tile_rows=64))
    assert jnp.allclose(out_l, ref_l, atol=2e-3, rtol=1e-3)

    # --- Test 4: training-mode inverted dropout (structure + kept-element scaling) ---
    p = 0.5
    out_tr = jax.block_until_ready(
        positional_encoding_forward(x, p=p, training=True, seed=123))
    assert out_tr.shape == (S, B, D)
    assert bool(jnp.all(jnp.isfinite(out_tr)))
    dropped = out_tr == 0
    frac = float(jnp.mean(dropped.astype(jnp.float32)))
    assert 0.2 < frac < 0.8                        # roughly p of the elements dropped
    kept = ~dropped
    assert jnp.allclose(jnp.where(kept, out_tr - ref / (1.0 - p), 0.0), 0.0,
                        atol=1e-4, rtol=1e-4)

    print("KERNEL_OK")
</pallas_src>

<mosaic_0001>
module attributes {stable_mosaic.version = 11 : i64} {
  func.func @_pe_kernel(%arg0: i32, %arg1: memref<1x512xf32, #tpu.memory_space<vmem>>, %arg2: memref<1x512xf32, #tpu.memory_space<vmem>>, %arg3: memref<1x512xf32, #tpu.memory_space<vmem>>, %arg4: memref<1x512xf32, #tpu.memory_space<vmem>>, %arg5: memref<1x512xf32, #tpu.memory_space<vmem>>) attributes {dimension_semantics = [#tpu.dimension_semantics<parallel>], iteration_bounds = array<i64: 1>, scalar_prefetch = 0 : i64, scratch_operands = 0 : i64, tpu.core_type = #tpu.core_type<tc>, window_params = [{transform_indices = @transform_0, window_bounds = array<i64: 1, 512>}, {pipeline_mode = #tpu.pipeline_mode<synchronous>, transform_indices = @transform_1, window_bounds = array<i64: 1, 512>}, {pipeline_mode = #tpu.pipeline_mode<synchronous>, transform_indices = @transform_2, window_bounds = array<i64: 1, 512>}, {pipeline_mode = #tpu.pipeline_mode<synchronous>, transform_indices = @transform_3, window_bounds = array<i64: 1, 512>}, {transform_indices = @transform_4, window_bounds = array<i64: 1, 512>}]} {
    %c1_i32 = arith.constant 1 : i32
    %0 = arith.muli %arg0, %c1_i32 : i32
    %1 = tpu.iota {dimensions = array<i32: 0>} : vector<1x512xi32>
    %2 = vector.broadcast %0 : i32 to vector<1x512xi32>
    %3 = arith.addi %2, %1 : vector<1x512xi32>
    %c8_i32 = arith.constant 8 : i32
    %4 = vector.broadcast %c8_i32 : i32 to vector<1x512xi32>
    %5 = arith.muli %3, %4 : vector<1x512xi32>
    %6 = arith.sitofp %5 : vector<1x512xi32> to vector<1x512xf32>
    %c0 = arith.constant 0 : index
    %c0_0 = arith.constant 0 : index
    %7 = vector.load %arg4[%c0, %c0_0] : memref<1x512xf32, #tpu.memory_space<vmem>>, vector<1x512xf32>
    %8 = arith.addf %6, %7 : vector<1x512xf32>
    %c0_1 = arith.constant 0 : index
    %c0_2 = arith.constant 0 : index
    %9 = vector.load %arg2[%c0_1, %c0_2] : memref<1x512xf32, #tpu.memory_space<vmem>>, vector<1x512xf32>
    %10 = arith.mulf %8, %9 : vector<1x512xf32>
    %c0_3 = arith.constant 0 : index
    %c0_4 = arith.constant 0 : index
    %11 = vector.load %arg3[%c0_3, %c0_4] : memref<1x512xf32, #tpu.memory_space<vmem>>, vector<1x512xf32>
    %cst = arith.constant 5.000000e-01 : f32
    %12 = vector.broadcast %cst : f32 to vector<1x512xf32>
    %13 = arith.cmpf ogt, %11, %12 : vector<1x512xf32>
    %14 = math.cos %10 : vector<1x512xf32>
    %15 = math.sin %10 : vector<1x512xf32>
    %16 = arith.select %13, %14, %15 : vector<1x512xi1>, vector<1x512xf32>
    %c0_5 = arith.constant 0 : index
    %c0_6 = arith.constant 0 : index
    %17 = vector.load %arg1[%c0_5, %c0_6] : memref<1x512xf32, #tpu.memory_space<vmem>>, vector<1x512xf32>
    %18 = arith.addf %17, %16 : vector<1x512xf32>
    %c0_7 = arith.constant 0 : index
    %c0_8 = arith.constant 0 : index
    %19 = vector.load %arg5[%c0_7, %c0_8] : memref<1x512xf32, #tpu.memory_space<vmem>>, vector<1x512xf32>
    tpu.vector_store %arg5[%c0_7, %c0_8], %18 {strides = array<i32>} : memref<1x512xf32, #tpu.memory_space<vmem>>, vector<1x512xf32>,
    return
  }
  func.func @transform_0(%arg0: i32) -> (i32, i32) {
    %c0_i32 = arith.constant 0 : i32
    %c0_i32_0 = arith.constant 0 : i32
    return %arg0, %c0_i32 : i32, i32
  }
  func.func @transform_1(%arg0: i32) -> (i32, i32) {
    %c0_i32 = arith.constant 0 : i32
    %c0_i32_0 = arith.constant 0 : i32
    %c0_i32_1 = arith.constant 0 : i32
    return %c0_i32, %c0_i32_0 : i32, i32
  }
  func.func @transform_2(%arg0: i32) -> (i32, i32) {
    %c0_i32 = arith.constant 0 : i32
    %c0_i32_0 = arith.constant 0 : i32
    %c0_i32_1 = arith.constant 0 : i32
    return %c0_i32, %c0_i32_0 : i32, i32
  }
  func.func @transform_3(%arg0: i32) -> (i32, i32) {
    %c0_i32 = arith.constant 0 : i32
    %c0_i32_0 = arith.constant 0 : i32
    %c0_i32_1 = arith.constant 0 : i32
    return %c0_i32, %c0_i32_0 : i32, i32
  }
  func.func @transform_4(%arg0: i32) -> (i32, i32) {
    %c0_i32 = arith.constant 0 : i32
    %c0_i32_0 = arith.constant 0 : i32
    return %arg0, %c0_i32 : i32, i32
  }
}

</mosaic_0001>

<llo_original>
// kernel: tpu_custom_call.1
$region0: #{tpu_custom_call.1}
  #allocation0 [shape = 'u32[]', space=smem, size = 0x4, offset = 0x4, fixed_abs, tag = 'smem constant byte address 0x4 - core index']
  #allocation1 [shape = 'u32[144,128]{1,0:T(1,128)}', space=vmem, size = 0x12000, scoped, tag = 'internal scratch']
  %s0 = inlined_call_operand.hbm [shape: f32[1,512], index: 0, kind: input, shape index: {}]
  %s1 = inlined_call_operand.hbm [shape: f32[1,512], index: 1, kind: input, shape index: {}]
  %s2 = inlined_call_operand.hbm [shape: f32[1,512], index: 2, kind: input, shape index: {}]
  %s3 = inlined_call_operand.vmem [shape: f32[1,512], index: 3, kind: input, shape index: {}]
  %s4 = inlined_call_operand.hbm [shape: f32[1,512], index: 4, kind: output, shape index: {}]
  %s5 = sld [smem:[#allocation0]]
  $region38: #{tpu_custom_call.1} parent=0
    _
  %s7 = ssub.s32 1, %s5
  %s8 = scalar_select 0, %s7, %s5
  $region1: #{tpu_custom_call.1} parent=0
    #allocation2 [shape = 'u8[2048]{0}', space=vmem, size = 0x800, scoped, tag = 'input window, operand 0, single buffered']
    #allocation3 [shape = 's32[1]{0}', space=sflag, size = 0x4, scoped, tag = 'scoped memory for tpu_custom_call.1']
    #allocation4 [shape = 's32[1]{0}', space=sflag, size = 0x4, scoped, tag = 'scoped memory for tpu_custom_call.1']
    #allocation5 [shape = 'u8[2048]{0}', space=vmem, size = 0x800, scoped, tag = 'input window, operand 1, single buffered']
    #allocation6 [shape = 's32[1]{0}', space=sflag, size = 0x4, scoped, tag = 'scoped memory for tpu_custom_call.1']
    #allocation7 [shape = 'u8[2048]{0}', space=vmem, size = 0x800, scoped, tag = 'input window, operand 2, single buffered']
    #allocation8 [shape = 'u8[2048]{0}', space=vmem, size = 0x800, scoped, tag = 'output window, operand 0, single buffered']
    %9 = vsyncpa [#allocation3], 0
    %10 = vsyncpa [#allocation6], 0
    %11 = vsyncpa [#allocation4], 0
    // Predicated region
    $region2: #{tpu_custom_call.1} parent=1 // pred_check
      _
    $region3: #{tpu_custom_call.1} parent=1 // pred_check_branch
      %13 = sbr.rel (0) target = $region5
    $region4: #{tpu_custom_call.1} parent=1 // pred_region
      %s15 = ssub.s32 64, 64
      %16 = vsyncadd [#allocation3], %s15
      %s18 = sshll.u32 [#allocation2], 4
      %s19 = int_to_ptr.vmem [resolvable:$true] %s18
      %21 = dma.hbm_to_vmem [thread:$0]  %s0, 64, %s19, [#allocation3]
    $region5: #{tpu_custom_call.1} parent=1 // pred_fallthru
      _
    // Predicated region
    $region6: #{tpu_custom_call.1} parent=1 // pred_check
      _
    $region7: #{tpu_custom_call.1} parent=1 // pred_check_branch
      %23 = sbr.rel (0) target = $region9
    $region8: #{tpu_custom_call.1} parent=1 // pred_region
      %s25 = ssub.s32 64, 64
      %26 = vsyncadd [#allocation6], %s25
      %s28 = sshll.u32 [#allocation5], 4
      %s29 = int_to_ptr.vmem [resolvable:$true] %s28
      %31 = dma.hbm_to_vmem [thread:$0]  %s1, 64, %s29, [#allocation6]
    $region9: #{tpu_custom_call.1} parent=1 // pred_fallthru
      _
    // Predicated region
    $region10: #{tpu_custom_call.1} parent=1 // pred_check
      _
    $region11: #{tpu_custom_call.1} parent=1 // pred_check_branch
      %33 = sbr.rel (0) target = $region13
    $region12: #{tpu_custom_call.1} parent=1 // pred_region
      %s35 = ssub.s32 64, 64
      %36 = vsyncadd [#allocation6], %s35
      %s38 = sshll.u32 [#allocation7], 4
      %s39 = int_to_ptr.vmem [resolvable:$true] %s38
      %41 = dma.hbm_to_vmem [thread:$0]  %s2, 64, %s39, [#allocation6]
    $region13: #{tpu_custom_call.1} parent=1 // pred_fallthru
      _
    // Predicated region
    $region14: #{tpu_custom_call.1} parent=1 // pred_check
      _
    $region15: #{tpu_custom_call.1} parent=1 // pred_check_branch
      %43 = sbr.rel (0) target = $region17
    $region16: #{tpu_custom_call.1} parent=1 // pred_region
      _
    $region17: #{tpu_custom_call.1} parent=1 // pred_fallthru
      _
    // Predicated region
    $region18: #{tpu_custom_call.1} parent=1 // pred_check
      _
    $region19: #{tpu_custom_call.1} parent=1 // pred_check_branch
      %45 = sbr.rel (0) target = $region21
    $region20: #{tpu_custom_call.1} parent=1 // pred_region
      %46 = dma.done [#allocation3], 64
    $region21: #{tpu_custom_call.1} parent=1 // pred_fallthru
      _
    // Predicated region
    $region22: #{tpu_custom_call.1} parent=1 // pred_check
      _
    $region23: #{tpu_custom_call.1} parent=1 // pred_check_branch
      %48 = sbr.rel (0) target = $region25
    $region24: #{tpu_custom_call.1} parent=1 // pred_region
      %49 = dma.done [#allocation6], 64
    $region25: #{tpu_custom_call.1} parent=1 // pred_fallthru
      _
    // Predicated region
    $region26: #{tpu_custom_call.1} parent=1 // pred_check
      _
    $region27: #{tpu_custom_call.1} parent=1 // pred_check_branch
      %51 = sbr.rel (0) target = $region29
    $region28: #{tpu_custom_call.1} parent=1 // pred_region
      %52 = dma.done [#allocation6], 64
    $region29: #{tpu_custom_call.1} parent=1 // pred_fallthru
      _
    %v53 = vlaneseq
    %v54 = vshrl.u32 %v53, 7
    %v55 = vstv 0
    %v56 = vadd.s32 %v55, %v54
    %v57 = vmul.u32 %v56, 8
    %v58 = vcvt.s32.f32 %v57
    %v59 = vld [vmem:[%s3] sm:$0xf]
    %v61 = vlaneseq
    %v62 = vshrl.u32 %v61, 7
    %v63 = vsub.s32 0, %v62
    %v64 = vrot.slane %v59, %v63
    %v65 = vlaneseq
    %v66 = vshrl.u32 %v65, 7
    %v67 = vsub.s32 1, %v66
    %v68 = vrot.slane %v59, %v67
    %v69 = vlaneseq
    %v70 = vshrl.u32 %v69, 7
    %v71 = vsub.s32 2, %v70
    %v72 = vrot.slane %v59, %v71
    %v73 = vlaneseq
    %v74 = vshrl.u32 %v73, 7
    %v75 = vsub.s32 3, %v74
    %v76 = vrot.slane %v59, %v75
    %v81 = vadd.f32 %v58, %v64
    %v82 = vadd.f32 %v58, %v68
    %v83 = vadd.f32 %v58, %v72
    %v84 = vadd.f32 %v58, %v76
    %v85 = vld [vmem:[#allocation5] sm:$0xf]
    %v87 = vlaneseq
    %v88 = vshrl.u32 %v87, 7
    %v89 = vsub.s32 0, %v88
    %v90 = vrot.slane %v85, %v89
    %v91 = vlaneseq
    %v92 = vshrl.u32 %v91, 7
    %v93 = vsub.s32 1, %v92
    %v94 = vrot.slane %v85, %v93
    %v95 = vlaneseq
    %v96 = vshrl.u32 %v95, 7
    %v97 = vsub.s32 2, %v96
    %v98 = vrot.slane %v85, %v97
    %v99 = vlaneseq
    %v100 = vshrl.u32 %v99, 7
    %v101 = vsub.s32 3, %v100
    %v102 = vrot.slane %v85, %v101
    %v107 = vmul.f32 %v81, %v90
    %v108 = vmul.f32 %v82, %v94
    %v109 = vmul.f32 %v83, %v98
    %v110 = vmul.f32 %v84, %v102
    %v111 = vld [vmem:[#allocation7] sm:$0xf]
    %vm112 = vcmp.gt.f32.partialorder %v111, 0.5
    %v113 = vand.u32 2147483647, %v107
    %vm114 = vcmp.le.f32.partialorder %v113, 0.7853982
    %vm115 = vcmp.lt.s32.totalorder %v107, 0
    %v116 = vand.u32 %v107, 2139095040
    %v117 = vshrl.u32 %v116, 23
    %v118 = vsub.s32 %v117, 127
    %v119 = vand.u32 2147483647, %v107
    %v120 = vand.u32 %v119, 8388607
    %v121 = vor.u32 %v120, 8388608
    %v122 = vsub.s32 0, %v121
    %v123 = vadd.s32 %v118, 1
    %vm124 = vcmp.gt.s32.totalorder %v123, 0
    %v125 = vsel %vm124, %v123, 0
    %v126 = vshrl.u32 %v125, 5
    %v127 = vand.u32 %v125, 31
    %v128 = vsub.s32 32, %v127
    %v129 = vshrl.u32 683565275, %v128
    %v130 = vshll.u32 683565275, %v127
    %v131 = vshrl.u32 2475754826, %v128
    %v132 = vor.u32 %v130, %v131
    %v133 = vshll.u32 2475754826, %v127
    %v134 = vshrl.u32 2131351028, %v128
    %v135 = vor.u32 %v133, %v134
    %v136 = vshll.u32 2131351028, %v127
    %v137 = vshrl.u32 2102212464, %v128
    %v138 = vor.u32 %v136, %v137
    %v139 = vshll.u32 2102212464, %v127
    %v140 = vshrl.u32 920167782, %v128
    %v141 = vor.u32 %v139, %v140
    %v142 = vshll.u32 920167782, %v127
    %v143 = vshrl.u32 1326507024, %v128
    %v144 = vor.u32 %v142, %v143
    %vm145 = vcmp.lt.s32.totalorder %v126, 1
    %vm146 = vcmp.lt.s32.totalorder %v126, 2
    %vm147 = vcmp.lt.s32.totalorder %v126, 3
    %vm148 = vcmp.lt.s32.totalorder %v126, 4
    %v149 = vsel %vm145, %v129, %v132
    %v150 = vsel %vm148, %v138, 2102212464
    %v151 = vsel %vm147, %v135, %v150
    %v152 = vsel %vm146, %v149, %v151
    %v153 = vsel %vm145, %v132, %v135
    %v154 = vsel %vm148, %v141, 920167782
    %v155 = vsel %vm147, %v138, %v154
    %v156 = vsel %vm146, %v153, %v155
    %v157 = vsel %vm145, %v135, %v138
    %v158 = vsel %vm148, %v144, 1326507024
    %v159 = vsel %vm147, %v141, %v158
    %v160 = vsel %vm146, %v157, %v159
    %v161 = vshll.u32 %v121, 8
    %v162 = vmul.u32.u64.compose %v161, %v160
    %v163 = vextract.low.u32 %v162
    %v164 = vextract.high.u32 %v162
    %v165 = vmul.u32.u64.compose %v161, %v156
    %v166 = vextract.low.u32 %v165
    %v167 = vextract.high.u32 %v165
    %v168 = vmul.u32 %v161, %v152
    %v169 = vadd.s32 %v164, %v166
    %vm170 = vc.u32 %v164, %v166
    %v171 = vadd.s32 %v167, 1
    %v172 = vsel %vm170, %v171, %v167
    %v173 = vadd.s32 %v168, %v172
    %v174 = vadd.s32 %v173, 536870912
    %v175 = vshrl.u32 %v174, 30
    %v176 = vshll.u32 %v175, 30
    %v177 = vsub.s32 %v173, %v176
    %vm178 = vcmp.lt.s32.totalorder %v177, 0
    %v179 = vsub.s32 0, %v177
    %v180 = vsel %vm178, %v179, %v177
    %v181 = vclz %v180
    %v182 = vsub.s32 %v181, 2
    %vm183 = vcmp.gt.s32.totalorder 0, %v182
    %v184 = vsel %vm183, 0, %v182
    %v185 = vsub.s32 32, %v184
    %v186 = vshll.u32 %v177, %v184
    %v187 = vshrl.u32 %v169, %v185
    %v188 = vor.u32 %v186, %v187
    %v189 = vsub.s32 4294967266, %v184
    %v190 = vadd.s32 %v189, 127
    %v191 = vshll.u32 %v190, 23
    %v192 = vor.u32 4788187, %v191
    %v193 = vand.u32 2147483647, %v192
    %v195 = vcvt.s32.f32 %v188
    %v196 = vmul.f32 %v195, %v193
    %v197 = vxor.u32 %v196, 2147483648
    %v198 = vsel %vm115, %v197, %v196
    %v199 = vsub.s32 4, %v175
    %v200 = vsel %vm115, %v199, %v175
    %v201 = vsel %vm114, %v107, %v198
    %v202 = vsel %vm114, 0, %v200
    %v203 = vcosq.f32.pop %v201
    %v204 = vsinq.f32.pop %v201
    %vm205 = vweird.f32 %v107
    %v206 = vand.u32 %v202, 3
    %vm207 = vcmp.lt.s32.totalorder %v206, 2
    %vm208 = vcmp.eq.s32.totalorder %v206, 0
    %v209 = vxor.u32 %v204, 2147483648
    %v210 = vsel %vm208, %v203, %v209
    %vm211 = vcmp.eq.s32.totalorder %v206, 2
    %v212 = vxor.u32 %v203, 2147483648
    %v213 = vsel %vm211, %v212, %v204
    %v214 = vsel %vm207, %v210, %v213
    %v215 = vsel %vm205, nan, %v214
    %v216 = vand.u32 2147483647, %v108
    %vm217 = vcmp.le.f32.partialorder %v216, 0.7853982
    %vm218 = vcmp.lt.s32.totalorder %v108, 0
    %v219 = vand.u32 %v108, 2139095040
    %v220 = vshrl.u32 %v219, 23
    %v221 = vsub.s32 %v220, 127
    %v222 = vand.u32 2147483647, %v108
    %v223 = vand.u32 %v222, 8388607
    %v224 = vor.u32 %v223, 8388608
    %v225 = vsub.s32 0, %v224
    %v226 = vadd.s32 %v221, 1
    %vm227 = vcmp.gt.s32.totalorder %v226, 0
    %v228 = vsel %vm227, %v226, 0
    %v229 = vshrl.u32 %v228, 5
    %v230 = vand.u32 %v228, 31
    %v231 = vsub.s32 32, %v230
    %v232 = vshrl.u32 683565275, %v231
    %v233 = vshll.u32 683565275, %v230
    %v234 = vshrl.u32 2475754826, %v231
    %v235 = vor.u32 %v233, %v234
    %v236 = vshll.u32 2475754826, %v230
    %v237 = vshrl.u32 2131351028, %v231
    %v238 = vor.u32 %v236, %v237
    %v239 = vshll.u32 2131351028, %v230
    %v240 = vshrl.u32 2102212464, %v231
    %v241 = vor.u32 %v239, %v240
    %v242 = vshll.u32 2102212464, %v230
    %v243 = vshrl.u32 920167782, %v231
    %v244 = vor.u32 %v242, %v243
    %v245 = vshll.u32 920167782, %v230
    %v246 = vshrl.u32 1326507024, %v231
    %v247 = vor.u32 %v245, %v246
    %vm248 = vcmp.lt.s32.totalorder %v229, 1
    %vm249 = vcmp.lt.s32.totalorder %v229, 2
    %vm250 = vcmp.lt.s32.totalorder %v229, 3
    %vm251 = vcmp.lt.s32.totalorder %v229, 4
    %v252 = vsel %vm248, %v232, %v235
    %v253 = vsel %vm251, %v241, 2102212464
    %v254 = vsel %vm250, %v238, %v253
    %v255 = vsel %vm249, %v252, %v254
    %v256 = vsel %vm248, %v235, %v238
    %v257 = vsel %vm251, %v244, 920167782
    %v258 = vsel %vm250, %v241, %v257
    %v259 = vsel %vm249, %v256, %v258
    %v260 = vsel %vm248, %v238, %v241
    %v261 = vsel %vm251, %v247, 1326507024
    %v262 = vsel %vm250, %v244, %v261
    %v263 = vsel %vm249, %v260, %v262
    %v264 = vshll.u32 %v224, 8
    %v265 = vmul.u32.u64.compose %v264, %v263
    %v266 = vextract.low.u32 %v265
    %v267 = vextract.high.u32 %v265
    %v268 = vmul.u32.u64.compose %v264, %v259
    %v269 = vextract.low.u32 %v268
    %v270 = vextract.high.u32 %v268
    %v271 = vmul.u32 %v264, %v255
    %v272 = vadd.s32 %v267, %v269
    %vm273 = vc.u32 %v267, %v269
    %v274 = vadd.s32 %v270, 1
    %v275 = vsel %vm273, %v274, %v270
    %v276 = vadd.s32 %v271, %v275
    %v277 = vadd.s32 %v276, 536870912
    %v278 = vshrl.u32 %v277, 30
    %v279 = vshll.u32 %v278, 30
    %v280 = vsub.s32 %v276, %v279
    %vm281 = vcmp.lt.s32.totalorder %v280, 0
    %v282 = vsub.s32 0, %v280
    %v283 = vsel %vm281, %v282, %v280
    %v284 = vclz %v283
    %v285 = vsub.s32 %v284, 2
    %vm286 = vcmp.gt.s32.totalorder 0, %v285
    %v287 = vsel %vm286, 0, %v285
    %v288 = vsub.s32 32, %v287
    %v289 = vshll.u32 %v280, %v287
    %v290 = vshrl.u32 %v272, %v288
    %v291 = vor.u32 %v289, %v290
    %v292 = vsub.s32 4294967266, %v287
    %v293 = vadd.s32 %v292, 127
    %v294 = vshll.u32 %v293, 23
    %v295 = vor.u32 4788187, %v294
    %v296 = vand.u32 2147483647, %v295
    %v298 = vcvt.s32.f32 %v291
    %v299 = vmul.f32 %v298, %v296
    %v300 = vxor.u32 %v299, 2147483648
    %v301 = vsel %vm218, %v300, %v299
    %v302 = vsub.s32 4, %v278
    %v303 = vsel %vm218, %v302, %v278
    %v304 = vsel %vm217, %v108, %v301
    %v305 = vsel %vm217, 0, %v303
    %v306 = vcosq.f32.pop %v304
    %v307 = vsinq.f32.pop %v304
    %vm308 = vweird.f32 %v108
    %v309 = vand.u32 %v305, 3
    %vm310 = vcmp.lt.s32.totalorder %v309, 2
    %vm311 = vcmp.eq.s32.totalorder %v309, 0
    %v312 = vxor.u32 %v307, 2147483648
    %v313 = vsel %vm311, %v306, %v312
    %vm314 = vcmp.eq.s32.totalorder %v309, 2
    %v315 = vxor.u32 %v306, 2147483648
    %v316 = vsel %vm314, %v315, %v307
    %v317 = vsel %vm310, %v313, %v316
    %v318 = vsel %vm308, nan, %v317
    %v319 = vand.u32 2147483647, %v109
    %vm320 = vcmp.le.f32.partialorder %v319, 0.7853982
    %vm321 = vcmp.lt.s32.totalorder %v109, 0
    %v322 = vand.u32 %v109, 2139095040
    %v323 = vshrl.u32 %v322, 23
    %v324 = vsub.s32 %v323, 127
    %v325 = vand.u32 2147483647, %v109
    %v326 = vand.u32 %v325, 8388607
    %v327 = vor.u32 %v326, 8388608
    %v328 = vsub.s32 0, %v327
    %v329 = vadd.s32 %v324, 1
    %vm330 = vcmp.gt.s32.totalorder %v329, 0
    %v331 = vsel %vm330, %v329, 0
    %v332 = vshrl.u32 %v331, 5
    %v333 = vand.u32 %v331, 31
    %v334 = vsub.s32 32, %v333
    %v335 = vshrl.u32 683565275, %v334
    %v336 = vshll.u32 683565275, %v333
    %v337 = vshrl.u32 2475754826, %v334
    %v338 = vor.u32 %v336, %v337
    %v339 = vshll.u32 2475754826, %v333
    %v340 = vshrl.u32 2131351028, %v334
    %v341 = vor.u32 %v339, %v340
    %v342 = vshll.u32 2131351028, %v333
    %v343 = vshrl.u32 2102212464, %v334
    %v344 = vor.u32 %v342, %v343
    %v345 = vshll.u32 2102212464, %v333
    %v346 = vshrl.u32 920167782, %v334
    %v347 = vor.u32 %v345, %v346
    %v348 = vshll.u32 920167782, %v333
    %v349 = vshrl.u32 1326507024, %v334
    %v350 = vor.u32 %v348, %v349
    %vm351 = vcmp.lt.s32.totalorder %v332, 1
    %vm352 = vcmp.lt.s32.totalorder %v332, 2
    %vm353 = vcmp.lt.s32.totalorder %v332, 3
    %vm354 = vcmp.lt.s32.totalorder %v332, 4
    %v355 = vsel %vm351, %v335, %v338
    %v356 = vsel %vm354, %v344, 2102212464
    %v357 = vsel %vm353, %v341, %v356
    %v358 = vsel %vm352, %v355, %v357
    %v359 = vsel %vm351, %v338, %v341
    %v360 = vsel %vm354, %v347, 920167782
    %v361 = vsel %vm353, %v344, %v360
    %v362 = vsel %vm352, %v359, %v361
    %v363 = vsel %vm351, %v341, %v344
    %v364 = vsel %vm354, %v350, 1326507024
    %v365 = vsel %vm353, %v347, %v364
    %v366 = vsel %vm352, %v363, %v365
    %v367 = vshll.u32 %v327, 8
    %v368 = vmul.u32.u64.compose %v367, %v366
    %v369 = vextract.low.u32 %v368
    %v370 = vextract.high.u32 %v368
    %v371 = vmul.u32.u64.compose %v367, %v362
    %v372 = vextract.low.u32 %v371
    %v373 = vextract.high.u32 %v371
    %v374 = vmul.u32 %v367, %v358
    %v375 = vadd.s32 %v370, %v372
    %vm376 = vc.u32 %v370, %v372
    %v377 = vadd.s32 %v373, 1
    %v378 = vsel %vm376, %v377, %v373
    %v379 = vadd.s32 %v374, %v378
    %v380 = vadd.s32 %v379, 536870912
    %v381 = vshrl.u32 %v380, 30
    %v382 = vshll.u32 %v381, 30
    %v383 = vsub.s32 %v379, %v382
    %vm384 = vcmp.lt.s32.totalorder %v383, 0
    %v385 = vsub.s32 0, %v383
    %v386 = vsel %vm384, %v385, %v383
    %v387 = vclz %v386
    %v388 = vsub.s32 %v387, 2
    %vm389 = vcmp.gt.s32.totalorder 0, %v388
    %v390 = vsel %vm389, 0, %v388
    %v391 = vsub.s32 32, %v390
    %v392 = vshll.u32 %v383, %v390
    %v393 = vshrl.u32 %v375, %v391
    %v394 = vor.u32 %v392, %v393
    %v395 = vsub.s32 4294967266, %v390
    %v396 = vadd.s32 %v395, 127
    %v397 = vshll.u32 %v396, 23
    %v398 = vor.u32 4788187, %v397
    %v399 = vand.u32 2147483647, %v398
    %v401 = vcvt.s32.f32 %v394
    %v402 = vmul.f32 %v401, %v399
    %v403 = vxor.u32 %v402, 2147483648
    %v404 = vsel %vm321, %v403, %v402
    %v405 = vsub.s32 4, %v381
    %v406 = vsel %vm321, %v405, %v381
    %v407 = vsel %vm320, %v109, %v404
    %v408 = vsel %vm320, 0, %v406
    %v409 = vcosq.f32.pop %v407
    %v410 = vsinq.f32.pop %v407
    %vm411 = vweird.f32 %v109
    %v412 = vand.u32 %v408, 3
    %vm413 = vcmp.lt.s32.totalorder %v412, 2
    %vm414 = vcmp.eq.s32.totalorder %v412, 0
    %v415 = vxor.u32 %v410, 2147483648
    %v416 = vsel %vm414, %v409, %v415
    %vm417 = vcmp.eq.s32.totalorder %v412, 2
    %v418 = vxor.u32 %v409, 2147483648
    %v419 = vsel %vm417, %v418, %v410
    %v420 = vsel %vm413, %v416, %v419
    %v421 = vsel %vm411, nan, %v420
    %v422 = vand.u32 2147483647, %v110
    %vm423 = vcmp.le.f32.partialorder %v422, 0.7853982
    %vm424 = vcmp.lt.s32.totalorder %v110, 0
    %v425 = vand.u32 %v110, 2139095040
    %v426 = vshrl.u32 %v425, 23
    %v427 = vsub.s32 %v426, 127
    %v428 = vand.u32 2147483647, %v110
    %v429 = vand.u32 %v428, 8388607
    %v430 = vor.u32 %v429, 8388608
    %v431 = vsub.s32 0, %v430
    %v432 = vadd.s32 %v427, 1
    %vm433 = vcmp.gt.s32.totalorder %v432, 0
    %v434 = vsel %vm433, %v432, 0
    %v435 = vshrl.u32 %v434, 5
    %v436 = vand.u32 %v434, 31
    %v437 = vsub.s32 32, %v436
    %v438 = vshrl.u32 683565275, %v437
    %v439 = vshll.u32 683565275, %v436
    %v440 = vshrl.u32 2475754826, %v437
    %v441 = vor.u32 %v439, %v440
    %v442 = vshll.u32 2475754826, %v436
    %v443 = vshrl.u32 2131351028, %v437
    %v444 = vor.u32 %v442, %v443
    %v445 = vshll.u32 2131351028, %v436
    %v446 = vshrl.u32 2102212464, %v437
    %v447 = vor.u32 %v445, %v446
    %v448 = vshll.u32 2102212464, %v436
    %v449 = vshrl.u32 920167782, %v437
    %v450 = vor.u32 %v448, %v449
    %v451 = vshll.u32 920167782, %v436
    %v452 = vshrl.u32 1326507024, %v437
    %v453 = vor.u32 %v451, %v452
    %vm454 = vcmp.lt.s32.totalorder %v435, 1
    %vm455 = vcmp.lt.s32.totalorder %v435, 2
    %vm456 = vcmp.lt.s32.totalorder %v435, 3
    %vm457 = vcmp.lt.s32.totalorder %v435, 4
    %v458 = vsel %vm454, %v438, %v441
    %v459 = vsel %vm457, %v447, 2102212464
    %v460 = vsel %vm456, %v444, %v459
    %v461 = vsel %vm455, %v458, %v460
    %v462 = vsel %vm454, %v441, %v444
    %v463 = vsel %vm457, %v450, 920167782
    %v464 = vsel %vm456, %v447, %v463
    %v465 = vsel %vm455, %v462, %v464
    %v466 = vsel %vm454, %v444, %v447
    %v467 = vsel %vm457, %v453, 1326507024
    %v468 = vsel %vm456, %v450, %v467
    %v469 = vsel %vm455, %v466, %v468
    %v470 = vshll.u32 %v430, 8
    %v471 = vmul.u32.u64.compose %v470, %v469
    %v472 = vextract.low.u32 %v471
    %v473 = vextract.high.u32 %v471
    %v474 = vmul.u32.u64.compose %v470, %v465
    %v475 = vextract.low.u32 %v474
    %v476 = vextract.high.u32 %v474
    %v477 = vmul.u32 %v470, %v461
    %v478 = vadd.s32 %v473, %v475
    %vm479 = vc.u32 %v473, %v475
    %v480 = vadd.s32 %v476, 1
    %v481 = vsel %vm479, %v480, %v476
    %v482 = vadd.s32 %v477, %v481
    %v483 = vadd.s32 %v482, 536870912
    %v484 = vshrl.u32 %v483, 30
    %v485 = vshll.u32 %v484, 30
    %v486 = vsub.s32 %v482, %v485
    %vm487 = vcmp.lt.s32.totalorder %v486, 0
    %v488 = vsub.s32 0, %v486
    %v489 = vsel %vm487, %v488, %v486
    %v490 = vclz %v489
    %v491 = vsub.s32 %v490, 2
    %vm492 = vcmp.gt.s32.totalorder 0, %v491
    %v493 = vsel %vm492, 0, %v491
    %v494 = vsub.s32 32, %v493
    %v495 = vshll.u32 %v486, %v493
    %v496 = vshrl.u32 %v478, %v494
    %v497 = vor.u32 %v495, %v496
    %v498 = vsub.s32 4294967266, %v493
    %v499 = vadd.s32 %v498, 127
    %v500 = vshll.u32 %v499, 23
    %v501 = vor.u32 4788187, %v500
    %v502 = vand.u32 2147483647, %v501
    %v504 = vcvt.s32.f32 %v497
    %v505 = vmul.f32 %v504, %v502
    %v506 = vxor.u32 %v505, 2147483648
    %v507 = vsel %vm424, %v506, %v505
    %v508 = vsub.s32 4, %v484
    %v509 = vsel %vm424, %v508, %v484
    %v510 = vsel %vm423, %v110, %v507
    %v511 = vsel %vm423, 0, %v509
    %v512 = vcosq.f32.pop %v510
    %v513 = vsinq.f32.pop %v510
    %vm514 = vweird.f32 %v110
    %v515 = vand.u32 %v511, 3
    %vm516 = vcmp.lt.s32.totalorder %v515, 2
    %vm517 = vcmp.eq.s32.totalorder %v515, 0
    %v518 = vxor.u32 %v513, 2147483648
    %v519 = vsel %vm517, %v512, %v518
    %vm520 = vcmp.eq.s32.totalorder %v515, 2
    %v521 = vxor.u32 %v512, 2147483648
    %v522 = vsel %vm520, %v521, %v513
    %v523 = vsel %vm516, %v519, %v522
    %v524 = vsel %vm514, nan, %v523
    %v525 = vand.u32 2147483647, %v107
    %vm526 = vcmp.le.f32.partialorder %v525, 0.7853982
    %vm527 = vcmp.lt.s32.totalorder %v107, 0
    %v528 = vand.u32 %v107, 2139095040
    %v529 = vshrl.u32 %v528, 23
    %v530 = vsub.s32 %v529, 127
    %v531 = vand.u32 2147483647, %v107
    %v532 = vand.u32 %v531, 8388607
    %v533 = vor.u32 %v532, 8388608
    %v534 = vsub.s32 0, %v533
    %v535 = vadd.s32 %v530, 1
    %vm536 = vcmp.gt.s32.totalorder %v535, 0
    %v537 = vsel %vm536, %v535, 0
    %v538 = vshrl.u32 %v537, 5
    %v539 = vand.u32 %v537, 31
    %v540 = vsub.s32 32, %v539
    %v541 = vshrl.u32 683565275, %v540
    %v542 = vshll.u32 683565275, %v539
    %v543 = vshrl.u32 2475754826, %v540
    %v544 = vor.u32 %v542, %v543
    %v545 = vshll.u32 2475754826, %v539
    %v546 = vshrl.u32 2131351028, %v540
    %v547 = vor.u32 %v545, %v546
    %v548 = vshll.u32 2131351028, %v539
    %v549 = vshrl.u32 2102212464, %v540
    %v550 = vor.u32 %v548, %v549
    %v551 = vshll.u32 2102212464, %v539
    %v552 = vshrl.u32 920167782, %v540
    %v553 = vor.u32 %v551, %v552
    %v554 = vshll.u32 920167782, %v539
    %v555 = vshrl.u32 1326507024, %v540
    %v556 = vor.u32 %v554, %v555
    %vm557 = vcmp.lt.s32.totalorder %v538, 1
    %vm558 = vcmp.lt.s32.totalorder %v538, 2
    %vm559 = vcmp.lt.s32.totalorder %v538, 3
    %vm560 = vcmp.lt.s32.totalorder %v538, 4
    %v561 = vsel %vm557, %v541, %v544
    %v562 = vsel %vm560, %v550, 2102212464
    %v563 = vsel %vm559, %v547, %v562
    %v564 = vsel %vm558, %v561, %v563
    %v565 = vsel %vm557, %v544, %v547
    %v566 = vsel %vm560, %v553, 920167782
    %v567 = vsel %vm559, %v550, %v566
    %v568 = vsel %vm558, %v565, %v567
    %v569 = vsel %vm557, %v547, %v550
    %v570 = vsel %vm560, %v556, 1326507024
    %v571 = vsel %vm559, %v553, %v570
    %v572 = vsel %vm558, %v569, %v571
    %v573 = vshll.u32 %v533, 8
    %v574 = vmul.u32.u64.compose %v573, %v572
    %v575 = vextract.low.u32 %v574
    %v576 = vextract.high.u32 %v574
    %v577 = vmul.u32.u64.compose %v573, %v568
    %v578 = vextract.low.u32 %v577
    %v579 = vextract.high.u32 %v577
    %v580 = vmul.u32 %v573, %v564
    %v581 = vadd.s32 %v576, %v578
    %vm582 = vc.u32 %v576, %v578
    %v583 = vadd.s32 %v579, 1
    %v584 = vsel %vm582, %v583, %v579
    %v585 = vadd.s32 %v580, %v584
    %v586 = vadd.s32 %v585, 536870912
    %v587 = vshrl.u32 %v586, 30
    %v588 = vshll.u32 %v587, 30
    %v589 = vsub.s32 %v585, %v588
    %vm590 = vcmp.lt.s32.totalorder %v589, 0
    %v591 = vsub.s32 0, %v589
    %v592 = vsel %vm590, %v591, %v589
    %v593 = vclz %v592
    %v594 = vsub.s32 %v593, 2
    %vm595 = vcmp.gt.s32.totalorder 0, %v594
    %v596 = vsel %vm595, 0, %v594
    %v597 = vsub.s32 32, %v596
    %v598 = vshll.u32 %v589, %v596
    %v599 = vshrl.u32 %v581, %v597
    %v600 = vor.u32 %v598, %v599
    %v601 = vsub.s32 4294967266, %v596
    %v602 = vadd.s32 %v601, 127
    %v603 = vshll.u32 %v602, 23
    %v604 = vor.u32 4788187, %v603
    %v605 = vand.u32 2147483647, %v604
    %v607 = vcvt.s32.f32 %v600
    %v608 = vmul.f32 %v607, %v605
    %v609 = vxor.u32 %v608, 2147483648
    %v610 = vsel %vm527, %v609, %v608
    %v611 = vsub.s32 4, %v587
    %v612 = vsel %vm527, %v611, %v587
    %v613 = vsel %vm526, %v107, %v610
    %v614 = vsel %vm526, 0, %v612
    %v615 = vcosq.f32.pop %v613
    %v616 = vsinq.f32.pop %v613
    %vm617 = vweird.f32 %v107
    %v618 = vadd.s32 %v614, 3
    %v619 = vand.u32 %v618, 3
    %vm620 = vcmp.lt.s32.totalorder %v619, 2
    %vm621 = vcmp.eq.s32.totalorder %v619, 0
    %v622 = vxor.u32 %v616, 2147483648
    %v623 = vsel %vm621, %v615, %v622
    %vm624 = vcmp.eq.s32.totalorder %v619, 2
    %v625 = vxor.u32 %v615, 2147483648
    %v626 = vsel %vm624, %v625, %v616
    %v627 = vsel %vm620, %v623, %v626
    %v628 = vsel %vm617, nan, %v627
    %v629 = vand.u32 2147483647, %v108
    %vm630 = vcmp.le.f32.partialorder %v629, 0.7853982
    %vm631 = vcmp.lt.s32.totalorder %v108, 0
    %v632 = vand.u32 %v108, 2139095040
    %v633 = vshrl.u32 %v632, 23
    %v634 = vsub.s32 %v633, 127
    %v635 = vand.u32 2147483647, %v108
    %v636 = vand.u32 %v635, 8388607
    %v637 = vor.u32 %v636, 8388608
    %v638 = vsub.s32 0, %v637
    %v639 = vadd.s32 %v634, 1
    %vm640 = vcmp.gt.s32.totalorder %v639, 0
    %v641 = vsel %vm640, %v639, 0
    %v642 = vshrl.u32 %v641, 5
    %v643 = vand.u32 %v641, 31
    %v644 = vsub.s32 32, %v643
    %v645 = vshrl.u32 683565275, %v644
    %v646 = vshll.u32 683565275, %v643
    %v647 = vshrl.u32 2475754826, %v644
    %v648 = vor.u32 %v646, %v647
    %v649 = vshll.u32 2475754826, %v643
    %v650 = vshrl.u32 2131351028, %v644
    %v651 = vor.u32 %v649, %v650
    %v652 = vshll.u32 2131351028, %v643
    %v653 = vshrl.u32 2102212464, %v644
    %v654 = vor.u32 %v652, %v653
    %v655 = vshll.u32 2102212464, %v643
    %v656 = vshrl.u32 920167782, %v644
    %v657 = vor.u32 %v655, %v656
    %v658 = vshll.u32 920167782, %v643
    %v659 = vshrl.u32 1326507024, %v644
    %v660 = vor.u32 %v658, %v659
    %vm661 = vcmp.lt.s32.totalorder %v642, 1
    %vm662 = vcmp.lt.s32.totalorder %v642, 2
    %vm663 = vcmp.lt.s32.totalorder %v642, 3
    %vm664 = vcmp.lt.s32.totalorder %v642, 4
    %v665 = vsel %vm661, %v645, %v648
    %v666 = vsel %vm664, %v654, 2102212464
    %v667 = vsel %vm663, %v651, %v666
    %v668 = vsel %vm662, %v665, %v667
    %v669 = vsel %vm661, %v648, %v651
    %v670 = vsel %vm664, %v657, 920167782
    %v671 = vsel %vm663, %v654, %v670
    %v672 = vsel %vm662, %v669, %v671
    %v673 = vsel %vm661, %v651, %v654
    %v674 = vsel %vm664, %v660, 1326507024
    %v675 = vsel %vm663, %v657, %v674
    %v676 = vsel %vm662, %v673, %v675
    %v677 = vshll.u32 %v637, 8
    %v678 = vmul.u32.u64.compose %v677, %v676
    %v679 = vextract.low.u32 %v678
    %v680 = vextract.high.u32 %v678
    %v681 = vmul.u32.u64.compose %v677, %v672
    %v682 = vextract.low.u32 %v681
    %v683 = vextract.high.u32 %v681
    %v684 = vmul.u32 %v677, %v668
    %v685 = vadd.s32 %v680, %v682
    %vm686 = vc.u32 %v680, %v682
    %v687 = vadd.s32 %v683, 1
    %v688 = vsel %vm686, %v687, %v683
    %v689 = vadd.s32 %v684, %v688
    %v690 = vadd.s32 %v689, 536870912
    %v691 = vshrl.u32 %v690, 30
    %v692 = vshll.u32 %v691, 30
    %v693 = vsub.s32 %v689, %v692
    %vm694 = vcmp.lt.s32.totalorder %v693, 0
    %v695 = vsub.s32 0, %v693
    %v696 = vsel %vm694, %v695, %v693
    %v697 = vclz %v696
    %v698 = vsub.s32 %v697, 2
    %vm699 = vcmp.gt.s32.totalorder 0, %v698
    %v700 = vsel %vm699, 0, %v698
    %v701 = vsub.s32 32, %v700
    %v702 = vshll.u32 %v693, %v700
    %v703 = vshrl.u32 %v685, %v701
    %v704 = vor.u32 %v702, %v703
    %v705 = vsub.s32 4294967266, %v700
    %v706 = vadd.s32 %v705, 127
    %v707 = vshll.u32 %v706, 23
    %v708 = vor.u32 4788187, %v707
    %v709 = vand.u32 2147483647, %v708
    %v711 = vcvt.s32.f32 %v704
    %v712 = vmul.f32 %v711, %v709
    %v713 = vxor.u32 %v712, 2147483648
    %v714 = vsel %vm631, %v713, %v712
    %v715 = vsub.s32 4, %v691
    %v716 = vsel %vm631, %v715, %v691
    %v717 = vsel %vm630, %v108, %v714
    %v718 = vsel %vm630, 0, %v716
    %v719 = vcosq.f32.pop %v717
    %v720 = vsinq.f32.pop %v717
    %vm721 = vweird.f32 %v108
    %v722 = vadd.s32 %v718, 3
    %v723 = vand.u32 %v722, 3
    %vm724 = vcmp.lt.s32.totalorder %v723, 2
    %vm725 = vcmp.eq.s32.totalorder %v723, 0
    %v726 = vxor.u32 %v720, 2147483648
    %v727 = vsel %vm725, %v719, %v726
    %vm728 = vcmp.eq.s32.totalorder %v723, 2
    %v729 = vxor.u32 %v719, 2147483648
    %v730 = vsel %vm728, %v729, %v720
    %v731 = vsel %vm724, %v727, %v730
    %v732 = vsel %vm721, nan, %v731
    %v733 = vand.u32 2147483647, %v109
    %vm734 = vcmp.le.f32.partialorder %v733, 0.7853982
    %vm735 = vcmp.lt.s32.totalorder %v109, 0
    %v736 = vand.u32 %v109, 2139095040
    %v737 = vshrl.u32 %v736, 23
    %v738 = vsub.s32 %v737, 127
    %v739 = vand.u32 2147483647, %v109
    %v740 = vand.u32 %v739, 8388607
    %v741 = vor.u32 %v740, 8388608
    %v742 = vsub.s32 0, %v741
    %v743 = vadd.s32 %v738, 1
    %vm744 = vcmp.gt.s32.totalorder %v743, 0
    %v745 = vsel %vm744, %v743, 0
    %v746 = vshrl.u32 %v745, 5
    %v747 = vand.u32 %v745, 31
    %v748 = vsub.s32 32, %v747
    %v749 = vshrl.u32 683565275, %v748
    %v750 = vshll.u32 683565275, %v747
    %v751 = vshrl.u32 2475754826, %v748
    %v752 = vor.u32 %v750, %v751
    %v753 = vshll.u32 2475754826, %v747
    %v754 = vshrl.u32 2131351028, %v748
    %v755 = vor.u32 %v753, %v754
    %v756 = vshll.u32 2131351028, %v747
    %v757 = vshrl.u32 2102212464, %v748
    %v758 = vor.u32 %v756, %v757
    %v759 = vshll.u32 2102212464, %v747
    %v760 = vshrl.u32 920167782, %v748
    %v761 = vor.u32 %v759, %v760
    %v762 = vshll.u32 920167782, %v747
    %v763 = vshrl.u32 1326507024, %v748
    %v764 = vor.u32 %v762, %v763
    %vm765 = vcmp.lt.s32.totalorder %v746, 1
    %vm766 = vcmp.lt.s32.totalorder %v746, 2
    %vm767 = vcmp.lt.s32.totalorder %v746, 3
    %vm768 = vcmp.lt.s32.totalorder %v746, 4
    %v769 = vsel %vm765, %v749, %v752
    %v770 = vsel %vm768, %v758, 2102212464
    %v771 = vsel %vm767, %v755, %v770
    %v772 = vsel %vm766, %v769, %v771
    %v773 = vsel %vm765, %v752, %v755
    %v774 = vsel %vm768, %v761, 920167782
    %v775 = vsel %vm767, %v758, %v774
    %v776 = vsel %vm766, %v773, %v775
    %v777 = vsel %vm765, %v755, %v758
    %v778 = vsel %vm768, %v764, 1326507024
    %v779 = vsel %vm767, %v761, %v778
    %v780 = vsel %vm766, %v777, %v779
    %v781 = vshll.u32 %v741, 8
    %v782 = vmul.u32.u64.compose %v781, %v780
    %v783 = vextract.low.u32 %v782
    %v784 = vextract.high.u32 %v782
    %v785 = vmul.u32.u64.compose %v781, %v776
    %v786 = vextract.low.u32 %v785
    %v787 = vextract.high.u32 %v785
    %v788 = vmul.u32 %v781, %v772
    %v789 = vadd.s32 %v784, %v786
    %vm790 = vc.u32 %v784, %v786
    %v791 = vadd.s32 %v787, 1
    %v792 = vsel %vm790, %v791, %v787
    %v793 = vadd.s32 %v788, %v792
    %v794 = vadd.s32 %v793, 536870912
    %v795 = vshrl.u32 %v794, 30
    %v796 = vshll.u32 %v795, 30
    %v797 = vsub.s32 %v793, %v796
    %vm798 = vcmp.lt.s32.totalorder %v797, 0
    %v799 = vsub.s32 0, %v797
    %v800 = vsel %vm798, %v799, %v797
    %v801 = vclz %v800
    %v802 = vsub.s32 %v801, 2
    %vm803 = vcmp.gt.s32.totalorder 0, %v802
    %v804 = vsel %vm803, 0, %v802
    %v805 = vsub.s32 32, %v804
    %v806 = vshll.u32 %v797, %v804
    %v807 = vshrl.u32 %v789, %v805
    %v808 = vor.u32 %v806, %v807
    %v809 = vsub.s32 4294967266, %v804
    %v810 = vadd.s32 %v809, 127
    %v811 = vshll.u32 %v810, 23
    %v812 = vor.u32 4788187, %v811
    %v813 = vand.u32 2147483647, %v812
    %v815 = vcvt.s32.f32 %v808
    %v816 = vmul.f32 %v815, %v813
    %v817 = vxor.u32 %v816, 2147483648
    %v818 = vsel %vm735, %v817, %v816
    %v819 = vsub.s32 4, %v795
    %v820 = vsel %vm735, %v819, %v795
    %v821 = vsel %vm734, %v109, %v818
    %v822 = vsel %vm734, 0, %v820
    %v823 = vcosq.f32.pop %v821
    %v824 = vsinq.f32.pop %v821
    %vm825 = vweird.f32 %v109
    %v826 = vadd.s32 %v822, 3
    %v827 = vand.u32 %v826, 3
    %vm828 = vcmp.lt.s32.totalorder %v827, 2
    %vm829 = vcmp.eq.s32.totalorder %v827, 0
    %v830 = vxor.u32 %v824, 2147483648
    %v831 = vsel %vm829, %v823, %v830
    %vm832 = vcmp.eq.s32.totalorder %v827, 2
    %v833 = vxor.u32 %v823, 2147483648
    %v834 = vsel %vm832, %v833, %v824
    %v835 = vsel %vm828, %v831, %v834
    %v836 = vsel %vm825, nan, %v835
    %v837 = vand.u32 2147483647, %v110
    %vm838 = vcmp.le.f32.partialorder %v837, 0.7853982
    %vm839 = vcmp.lt.s32.totalorder %v110, 0
    %v840 = vand.u32 %v110, 2139095040
    %v841 = vshrl.u32 %v840, 23
    %v842 = vsub.s32 %v841, 127
    %v843 = vand.u32 2147483647, %v110
    %v844 = vand.u32 %v843, 8388607
    %v845 = vor.u32 %v844, 8388608
    %v846 = vsub.s32 0, %v845
    %v847 = vadd.s32 %v842, 1
    %vm848 = vcmp.gt.s32.totalorder %v847, 0
    %v849 = vsel %vm848, %v847, 0
    %v850 = vshrl.u32 %v849, 5
    %v851 = vand.u32 %v849, 31
    %v852 = vsub.s32 32, %v851
    %v853 = vshrl.u32 683565275, %v852
    %v854 = vshll.u32 683565275, %v851
    %v855 = vshrl.u32 2475754826, %v852
    %v856 = vor.u32 %v854, %v855
    %v857 = vshll.u32 2475754826, %v851
    %v858 = vshrl.u32 2131351028, %v852
    %v859 = vor.u32 %v857, %v858
    %v860 = vshll.u32 2131351028, %v851
    %v861 = vshrl.u32 2102212464, %v852
    %v862 = vor.u32 %v860, %v861
    %v863 = vshll.u32 2102212464, %v851
    %v864 = vshrl.u32 920167782, %v852
    %v865 = vor.u32 %v863, %v864
    %v866 = vshll.u32 920167782, %v851
    %v867 = vshrl.u32 1326507024, %v852
    %v868 = vor.u32 %v866, %v867
    %vm869 = vcmp.lt.s32.totalorder %v850, 1
    %vm870 = vcmp.lt.s32.totalorder %v850, 2
    %vm871 = vcmp.lt.s32.totalorder %v850, 3
    %vm872 = vcmp.lt.s32.totalorder %v850, 4
    %v873 = vsel %vm869, %v853, %v856
    %v874 = vsel %vm872, %v862, 2102212464
    %v875 = vsel %vm871, %v859, %v874
    %v876 = vsel %vm870, %v873, %v875
    %v877 = vsel %vm869, %v856, %v859
    %v878 = vsel %vm872, %v865, 920167782
    %v879 = vsel %vm871, %v862, %v878
    %v880 = vsel %vm870, %v877, %v879
    %v881 = vsel %vm869, %v859, %v862
    %v882 = vsel %vm872, %v868, 1326507024
    %v883 = vsel %vm871, %v865, %v882
    %v884 = vsel %vm870, %v881, %v883
    %v885 = vshll.u32 %v845, 8
    %v886 = vmul.u32.u64.compose %v885, %v884
    %v887 = vextract.low.u32 %v886
    %v888 = vextract.high.u32 %v886
    %v889 = vmul.u32.u64.compose %v885, %v880
    %v890 = vextract.low.u32 %v889
    %v891 = vextract.high.u32 %v889
    %v892 = vmul.u32 %v885, %v876
    %v893 = vadd.s32 %v888, %v890
    %vm894 = vc.u32 %v888, %v890
    %v895 = vadd.s32 %v891, 1
    %v896 = vsel %vm894, %v895, %v891
    %v897 = vadd.s32 %v892, %v896
    %v898 = vadd.s32 %v897, 536870912
    %v899 = vshrl.u32 %v898, 30
    %v900 = vshll.u32 %v899, 30
    %v901 = vsub.s32 %v897, %v900
    %vm902 = vcmp.lt.s32.totalorder %v901, 0
    %v903 = vsub.s32 0, %v901
    %v904 = vsel %vm902, %v903, %v901
    %v905 = vclz %v904
    %v906 = vsub.s32 %v905, 2
    %vm907 = vcmp.gt.s32.totalorder 0, %v906
    %v908 = vsel %vm907, 0, %v906
    %v909 = vsub.s32 32, %v908
    %v910 = vshll.u32 %v901, %v908
    %v911 = vshrl.u32 %v893, %v909
    %v912 = vor.u32 %v910, %v911
    %v913 = vsub.s32 4294967266, %v908
    %v914 = vadd.s32 %v913, 127
    %v915 = vshll.u32 %v914, 23
    %v916 = vor.u32 4788187, %v915
    %v917 = vand.u32 2147483647, %v916
    %v919 = vcvt.s32.f32 %v912
    %v920 = vmul.f32 %v919, %v917
    %v921 = vxor.u32 %v920, 2147483648
    %v922 = vsel %vm839, %v921, %v920
    %v923 = vsub.s32 4, %v899
    %v924 = vsel %vm839, %v923, %v899
    %v925 = vsel %vm838, %v110, %v922
    %v926 = vsel %vm838, 0, %v924
    %v927 = vcosq.f32.pop %v925
    %v928 = vsinq.f32.pop %v925
    %vm929 = vweird.f32 %v110
    %v930 = vadd.s32 %v926, 3
    %v931 = vand.u32 %v930, 3
    %vm932 = vcmp.lt.s32.totalorder %v931, 2
    %vm933 = vcmp.eq.s32.totalorder %v931, 0
    %v934 = vxor.u32 %v928, 2147483648
    %v935 = vsel %vm933, %v927, %v934
    %vm936 = vcmp.eq.s32.totalorder %v931, 2
    %v937 = vxor.u32 %v927, 2147483648
    %v938 = vsel %vm936, %v937, %v928
    %v939 = vsel %vm932, %v935, %v938
    %v940 = vsel %vm929, nan, %v939
    %v945 = vcombine.low %v215, %v318
    %v946 = vcombine.low %v421, %v524
    %v948 = vunpack.c.l.s4 1966171168
    %v949 = vunpack.c.0.s8 %v948
    %v950 = vlaneseq
    %v951 = vshrl.u32 %v950, 7
    %v952 = vsub.s32 %v949, %v951
    %v953 = vrot.slane %v945, %v952
    %v955 = vunpack.c.l.s4 1966171168
    %v956 = vunpack.c.0.s8 %v955
    %v957 = vlaneseq
    %v958 = vshrl.u32 %v957, 7
    %v959 = vsub.s32 %v956, %v958
    %v960 = vrot.slane %v946, %v959
    %v961 = vcombine.low %v953, %v960
    %v963 = vunpack.c.l.s4 1966171168
    %v964 = vunpack.c.0.s8 %v963
    %v965 = vlaneseq
    %v966 = vshrl.u32 %v965, 7
    %v967 = vsub.s32 %v964, %v966
    %v968 = vrot.slane %v961, %v967
    %v974 = vcombine.low %v628, %v732
    %v975 = vcombine.low %v836, %v940
    %v977 = vunpack.c.l.s4 1966171168
    %v978 = vunpack.c.0.s8 %v977
    %v979 = vlaneseq
    %v980 = vshrl.u32 %v979, 7
    %v981 = vsub.s32 %v978, %v980
    %v982 = vrot.slane %v974, %v981
    %v984 = vunpack.c.l.s4 1966171168
    %v985 = vunpack.c.0.s8 %v984
    %v986 = vlaneseq
    %v987 = vshrl.u32 %v986, 7
    %v988 = vsub.s32 %v985, %v987
    %v989 = vrot.slane %v975, %v988
    %v990 = vcombine.low %v982, %v989
    %v992 = vunpack.c.l.s4 1966171168
    %v993 = vunpack.c.0.s8 %v992
    %v994 = vlaneseq
    %v995 = vshrl.u32 %v994, 7
    %v996 = vsub.s32 %v993, %v995
    %v997 = vrot.slane %v990, %v996
    %v999 = vsel %vm112, %v968, %v997
    %v1000 = vld [vmem:[#allocation2] sm:$0xf]
    %v1001 = vadd.f32 %v1000, %v999
    %v1002 = vlaneseq
    %vm1003 = vcmp.ge.s32.totalorder %v1002, 0
    %vm1004 = vcmp.lt.s32.totalorder %v1002, 512
    %vm1005 = vmand %vm1003, %vm1004
    %1006 = vst.msk [vmem:[#allocation8] sm:$0xf] %vm1005, %v1001
    // Predicated region
    $region30: #{tpu_custom_call.1} parent=1 // pred_check
      _
    $region31: #{tpu_custom_call.1} parent=1 // pred_check_branch
      %1008 = sbr.rel (0) target = $region33
    $region32: #{tpu_custom_call.1} parent=1 // pred_region
      %s1010 = ssub.s32 64, 64
      %1011 = vsyncadd [#allocation4], %s1010
      %s1013 = sshll.u32 [#allocation8], 4
      %s1014 = int_to_ptr.vmem [resolvable:$true] %s1013
      %1016 = dma.vmem_to_hbm [thread:$0]  %s1014, 64, %s4, [#allocation4]
    $region33: #{tpu_custom_call.1} parent=1 // pred_fallthru
      _
    // Predicated region
    $region34: #{tpu_custom_call.1} parent=1 // pred_check
      _
    $region35: #{tpu_custom_call.1} parent=1 // pred_check_branch
      %1018 = sbr.rel (0) target = $region37
    $region36: #{tpu_custom_call.1} parent=1 // pred_region
      %1019 = dma.done [#allocation4], 64
    $region37: #{tpu_custom_call.1} parent=1 // pred_fallthru
      _
    %1020 = vsyncpa [#allocation3], 1
    %1021 = vsyncpa [#allocation6], 1
    %1022 = vsyncpa [#allocation4], 1

</llo_original>
